<compile_context>
chip_gen: v7x
topology: tpu7x:2x2x1
jax: 0.10.0
libtpu: 0.0.40
codegen_flags: <defaults>
</compile_context>

<pallas_src>
import itertools
import math

import numpy as np

import jax
import jax.numpy as jnp
from jax.experimental import pallas as pl
from jax.experimental.pallas import tpu as pltpu


# ----------------------------------------------------------------------------
# Host-side codebook construction (numpy) -- mirrors ReedMullerCode.__init__.
# ----------------------------------------------------------------------------
def _get_generator_matrix(latent_dim, num_classes):
    """RM(m, r) generator matrix with 2**m = latent_dim and r the smallest
    integer such that sum_{i<=r} C(m, i) >= log2(num_classes)."""
    if latent_dim < np.log2(num_classes):
        return None, None
    m = int(np.log2(latent_dim))
    terms = [math.comb(m, i) for i in range(m + 1)]
    partial = np.cumsum(terms)
    r = int(np.min(np.where(partial >= np.log2(num_classes))))
    code_len = int(latent_dim)
    code_dim = int(np.sum([math.comb(m, i) for i in range(r + 1)]))
    gen = np.zeros((code_dim, code_len), dtype=int)
    gen[0, :] = np.ones((code_len,), dtype=int)
    if r > 0:
        for i in range(1, m + 1):
            x_i = np.array(
                ([0] * 2 ** (m - i) + [1] * 2 ** (m - i)) * 2 ** (i - 1),
                dtype=int)
            gen[i, :] = x_i
        next_cw_idx = m + 1
        for poly_order in range(2, r + 1):
            for combo in itertools.combinations(range(1, m + 1), poly_order):
                gen[next_cw_idx, :] = np.prod(gen[list(combo)], axis=0,
                                              dtype=int)
                next_cw_idx += 1
    return gen, code_dim


def _enumerate_codewords(gen, code_dim, num_classes):
    """Codeword for class k = mod-2 sum of generator rows selected by the
    binary representation of k (LSB first)."""
    code_dim = gen.shape[0]
    latent_dim = gen.shape[1]
    cb = np.zeros((num_classes, latent_dim), dtype=int)
    for k in range(num_classes):
        bin_rep = np.array(list(np.binary_repr(k).zfill(code_dim))).astype(int)
        bin_rep = np.flip(bin_rep).reshape(1, -1)
        ck = np.sum(bin_rep @ gen, axis=0, dtype=int) % 2
        cb[k, :] = ck
    return cb


def _rescale_to_unit_length(rm_codebook, latent_dim):
    to_hadamard = 2.0 * (rm_codebook - 0.5)
    return to_hadamard / np.sqrt(latent_dim)


def make_reed_muller_codebook(latent_dim, num_classes, randomise=False,
                              key=None):
    """Builds the (num_classes, latent_dim) unit-norm RM prototype codebook."""
    log2_d = np.log2(latent_dim)
    assert np.isclose(log2_d % 1, 0), \
        'Expected a latent dimension which is a power of 2.'
    gen, code_dim = _get_generator_matrix(latent_dim, num_classes)
    if gen is None:
        return None
    rm_cb = _enumerate_codewords(gen, code_dim, num_classes)
    # f32 keeps the forward numerically exact; serve in bf16 only if
    # downstream tolerates rounding of +-1/sqrt(latent_dim).
    cb = _rescale_to_unit_length(rm_cb, latent_dim).astype(np.float32)
    cb = jnp.asarray(cb, dtype=jnp.float32)
    if randomise:
        if key is None:
            key = jax.random.PRNGKey(0)
        perm = jax.random.permutation(key, num_classes)
        cb = cb[perm]
    return cb


# ----------------------------------------------------------------------------
# Pallas kernel: out[i, :] = codebook[y[i], :], TB rows per grid step.
# Gather realised as a one-hot MXU matmul against the VMEM-resident codebook.
# ----------------------------------------------------------------------------
def _gather_kernel(y_ref, cb_ref, o_ref):
    # y_ref : (1, TB) int32 class indices for this tile (lane-dense)
    # cb_ref: (C, D)  full codebook, resident in VMEM (constant index_map)
    # o_ref : (TB, D) output tile
    num_classes = cb_ref.shape[0]
    tb = o_ref.shape[0]
    # In-kernel clip (VALU slot is idle here): an out-of-range label selects
    # the nearest valid class rather than addressing arbitrary memory.
    idx = jnp.clip(y_ref[...], 0, num_classes - 1)               # (1, TB)
    cls = jax.lax.broadcasted_iota(jnp.int32, (num_classes, tb), 0)
    onehot_t = (idx == cls).astype(cb_ref.dtype)                 # (C, TB)
    # onehot_t.T @ codebook -> (TB, D); the MXU takes the transposed lhs
    # directly (contracting dim 0 of both operands), no relayout needed.
    out = jax.lax.dot_general(
        onehot_t, cb_ref[...],
        dimension_numbers=(((0,), (0,)), ((), ())),
        preferred_element_type=jnp.float32)
    o_ref[...] = out.astype(o_ref.dtype)


def _choose_tile_rows(batch, latent_dim, itemsize, max_rows):
    """Pick the per-step row tile: multiple of 8, near-equal tiles, VMEM-safe."""
    # Keep one output buffer under ~4 MiB so 2x double-buffered tiles stay
    # inside v5e's 16 MiB default scoped VMEM limit without flags.
    bytes_per_row = max(1, latent_dim * itemsize)
    vmem_cap_rows = max(8, (4 * 1024 * 1024) // bytes_per_row)
    cap = max(8, min(int(max_rows), vmem_cap_rows))
    cap = (cap // 8) * 8
    rounded = max(8, ((batch + 7) // 8) * 8)
    if rounded <= cap:
        # Single tile; batch_pad == batch whenever batch is a multiple of 8.
        return rounded
    num_tiles = -(-rounded // cap)            # ceil -> grid >= 2 steps
    tb = -(-rounded // num_tiles)             # near-equal tiles, tiny padding
    tb = ((tb + 7) // 8) * 8
    return tb


def codebook_lookup(codebook, y, *, block_rows=4096):
    """Pallas forward of ReedMullerCode: out = codebook[y] (any-shaped y)."""
    num_classes, latent_dim = codebook.shape
    y_flat = jnp.ravel(y).astype(jnp.int32)
    batch = y_flat.shape[0]

    tb = _choose_tile_rows(batch, latent_dim, codebook.dtype.itemsize,
                           block_rows)
    num_tiles = -(-batch // tb)
    batch_pad = num_tiles * tb

    if batch_pad != batch:
        # Padded tail rows look up class 0 and are sliced off below.
        y_flat = jnp.pad(y_flat, (0, batch_pad - batch))
    # Lane-dense index layout: each grid step reads a (1, tb) block.
    y_tiles = y_flat.reshape(num_tiles, tb)

    out = pl.pallas_call(
        _gather_kernel,
        out_shape=jax.ShapeDtypeStruct((batch_pad, latent_dim),
                                       codebook.dtype),
        grid_spec=pltpu.PrefetchScalarGridSpec(
            num_scalar_prefetch=0,
            grid=(num_tiles,),
            in_specs=[
                # per-tile label row, lane-dense
                pl.BlockSpec((1, tb), lambda i: (i, 0)),
                # whole codebook, resident across all grid steps
                pl.BlockSpec((num_classes, latent_dim), lambda i: (0, 0)),
            ],
            out_specs=pl.BlockSpec((tb, latent_dim), lambda i: (i, 0)),
        ),
        compiler_params=pltpu.CompilerParams(
            dimension_semantics=("parallel",)),
    )(y_tiles, codebook)

    if batch_pad != batch:
        out = out[:batch]
    return out.reshape(y.shape + (latent_dim,))


if __name__ == "__main__":
    # Small but representative shapes: latent_dim a power of 2, num_classes
    # small, y any shape.
    latent_dim = 128
    num_classes = 16

    codebook = make_reed_muller_codebook(latent_dim, num_classes,
                                         randomise=False)
    assert codebook is not None and codebook.shape == (num_classes, latent_dim)

    key = jax.random.PRNGKey(0)
    k1, k2 = jax.random.split(key)

    # Case 1: multiple-of-8 batch -> single tile, no padding, no final slice.
    y1 = jax.random.randint(k1, (4, 16), 0, num_classes, dtype=jnp.int32)
    out1 = jax.block_until_ready(codebook_lookup(codebook, y1))
    ref1 = codebook[y1]
    assert out1.shape == y1.shape + (latent_dim,)
    assert bool(jnp.allclose(out1, ref1, atol=1e-6)), \
        "Pallas gather mismatch vs reference (case 1)"

    # Case 2: ragged batch with a small tile override -> multi-step grid,
    # padded tail rows, final slice path.
    y2 = jax.random.randint(k2, (40,), 0, num_classes, dtype=jnp.int32)
    out2 = jax.block_until_ready(codebook_lookup(codebook, y2, block_rows=16))
    ref2 = codebook[y2]
    assert out2.shape == y2.shape + (latent_dim,)
    assert bool(jnp.allclose(out2, ref2, atol=1e-6)), \
        "Pallas gather mismatch vs reference (case 2)"

    # TODO(synk): verify_quality() is a host-side diagnostic print; it has no
    # kernel equivalent and is intentionally not implemented here.
    print("KERNEL_OK")
</pallas_src>

<mosaic_0001>
module attributes {stable_mosaic.version = 11 : i64} {
  func.func @_gather_kernel(%arg0: i32, %arg1: memref<1x64xi32, #tpu.memory_space<vmem>>, %arg2: memref<16x128xf32, #tpu.memory_space<vmem>>, %arg3: memref<64x128xf32, #tpu.memory_space<vmem>>) attributes {dimension_semantics = [#tpu.dimension_semantics<parallel>], iteration_bounds = array<i64: 1>, scalar_prefetch = 0 : i64, scratch_operands = 0 : i64, tpu.core_type = #tpu.core_type<tc>, window_params = [{transform_indices = @transform_0, window_bounds = array<i64: 1, 64>}, {pipeline_mode = #tpu.pipeline_mode<synchronous>, transform_indices = @transform_1, window_bounds = array<i64: 16, 128>}, {transform_indices = @transform_2, window_bounds = array<i64: 64, 128>}]} {
    %c0 = arith.constant 0 : index
    %c0_0 = arith.constant 0 : index
    %0 = vector.load %arg1[%c0, %c0_0] : memref<1x64xi32, #tpu.memory_space<vmem>>, vector<1x64xi32>
    %c0_i32 = arith.constant 0 : i32
    %c15_i32 = arith.constant 15 : i32
    %1 = vector.broadcast %c0_i32 : i32 to vector<1x64xi32>
    %2 = arith.maxsi %1, %0 : vector<1x64xi32>
    %3 = vector.broadcast %c15_i32 : i32 to vector<1x64xi32>
    %4 = arith.minsi %3, %2 : vector<1x64xi32>
    %5 = tpu.iota {dimensions = array<i32: 0>} : vector<16x64xi32>
    %6 = vector.broadcast %4 : vector<1x64xi32> to vector<16x64xi32>
    %7 = arith.cmpi eq, %6, %5 : vector<16x64xi32>
    %8 = arith.extui %7 : vector<16x64xi1> to vector<16x64xi32>
    %9 = arith.sitofp %8 : vector<16x64xi32> to vector<16x64xf32>
    %c0_1 = arith.constant 0 : index
    %c0_2 = arith.constant 0 : index
    %10 = vector.load %arg2[%c0_1, %c0_2] : memref<16x128xf32, #tpu.memory_space<vmem>>, vector<16x128xf32>
    %cst = arith.constant dense<0.000000e+00> : vector<64x128xf32>
    %11 = tpu.matmul %9, %10, %cst {dimension_numbers = #tpu.dot_dimension_numbers<[0], [0], [1], [1], [0, 1, 1, 1], [], []>} : vector<16x64xf32>, vector<16x128xf32>, vector<64x128xf32> -> vector<64x128xf32>
    %c0_3 = arith.constant 0 : index
    %c0_4 = arith.constant 0 : index
    %12 = vector.load %arg3[%c0_3, %c0_4] : memref<64x128xf32, #tpu.memory_space<vmem>>, vector<64x128xf32>
    tpu.vector_store %arg3[%c0_3, %c0_4], %11 {strides = array<i32>} : memref<64x128xf32, #tpu.memory_space<vmem>>, vector<64x128xf32>,
    return
  }
  func.func @transform_0(%arg0: i32) -> (i32, i32) {
    %c0_i32 = arith.constant 0 : i32
    %c0_i32_0 = arith.constant 0 : i32
    return %arg0, %c0_i32 : i32, i32
  }
  func.func @transform_1(%arg0: i32) -> (i32, i32) {
    %c0_i32 = arith.constant 0 : i32
    %c0_i32_0 = arith.constant 0 : i32
    %c0_i32_1 = arith.constant 0 : i32
    return %c0_i32, %c0_i32_0 : i32, i32
  }
  func.func @transform_2(%arg0: i32) -> (i32, i32) {
    %c0_i32 = arith.constant 0 : i32
    %c0_i32_0 = arith.constant 0 : i32
    return %arg0, %c0_i32 : i32, i32
  }
}

</mosaic_0001>

<llo_original>
// kernel: tpu_custom_call.1
$region0: #{tpu_custom_call.1}
  #allocation0 [shape = 'u32[]', space=smem, size = 0x4, offset = 0x4, fixed_abs, tag = 'smem constant byte address 0x4 - core index']
  #allocation1 [shape = 'u32[144,128]{1,0:T(1,128)}', space=vmem, size = 0x12000, scoped, tag = 'internal scratch']
  %s0 = inlined_call_operand.hbm [shape: s32[1,64], index: 0, kind: input, shape index: {}]
  %s1 = inlined_call_operand.hbm [shape: f32[16,128], index: 1, kind: input, shape index: {}]
  %s2 = inlined_call_operand.hbm [shape: f32[64,128], index: 2, kind: output, shape index: {}]
  %s3 = sld [smem:[#allocation0]]
  $region26: #{tpu_custom_call.1} parent=0
    _
  %s5 = ssub.s32 1, %s3
  %s6 = scalar_select 0, %s5, %s3
  $region1: #{tpu_custom_call.1} parent=0
    #allocation2 [shape = 'u8[512]{0}', space=vmem, size = 0x400, scoped, tag = 'input window, operand 0, single buffered']
    #allocation3 [shape = 's32[1]{0}', space=sflag, size = 0x4, scoped, tag = 'scoped memory for tpu_custom_call.1']
    #allocation4 [shape = 's32[1]{0}', space=sflag, size = 0x4, scoped, tag = 'scoped memory for tpu_custom_call.1']
    #allocation5 [shape = 'u8[8192]{0}', space=vmem, size = 0x2000, scoped, tag = 'input window, operand 1, single buffered']
    #allocation6 [shape = 's32[1]{0}', space=sflag, size = 0x4, scoped, tag = 'scoped memory for tpu_custom_call.1']
    #allocation7 [shape = 'u8[32768]{0}', space=vmem, size = 0x8000, scoped, tag = 'output window, operand 0, single buffered']
    %7 = vsyncpa [#allocation3], 0
    %8 = vsyncpa [#allocation6], 0
    %9 = vsyncpa [#allocation4], 0
    // Predicated region
    $region2: #{tpu_custom_call.1} parent=1 // pred_check
      _
    $region3: #{tpu_custom_call.1} parent=1 // pred_check_branch
      %11 = sbr.rel (0) target = $region5
    $region4: #{tpu_custom_call.1} parent=1 // pred_region
      %s13 = ssub.s32 16, 16
      %14 = vsyncadd [#allocation3], %s13
      %s16 = sshll.u32 [#allocation2], 4
      %s17 = int_to_ptr.vmem [resolvable:$true] %s16
      %19 = dma.hbm_to_vmem [thread:$0]  %s0, 16, %s17, [#allocation3]
    $region5: #{tpu_custom_call.1} parent=1 // pred_fallthru
      _
    // Predicated region
    $region6: #{tpu_custom_call.1} parent=1 // pred_check
      _
    $region7: #{tpu_custom_call.1} parent=1 // pred_check_branch
      %21 = sbr.rel (0) target = $region9
    $region8: #{tpu_custom_call.1} parent=1 // pred_region
      %s23 = ssub.s32 256, 256
      %24 = vsyncadd [#allocation6], %s23
      %s25 = sshll.u32 [#allocation5], 4
      %s26 = int_to_ptr.vmem [resolvable:$true] %s25
      %31 = dma.hbm_to_vmem [thread:$0]  %s1, 256, %s26, [#allocation6], 128, 128, 8
    $region9: #{tpu_custom_call.1} parent=1 // pred_fallthru
      _
    // Predicated region
    $region10: #{tpu_custom_call.1} parent=1 // pred_check
      _
    $region11: #{tpu_custom_call.1} parent=1 // pred_check_branch
      %33 = sbr.rel (0) target = $region13
    $region12: #{tpu_custom_call.1} parent=1 // pred_region
      %34 = dma.done [#allocation3], 16
    $region13: #{tpu_custom_call.1} parent=1 // pred_fallthru
      _
    // Predicated region
    $region14: #{tpu_custom_call.1} parent=1 // pred_check
      _
    $region15: #{tpu_custom_call.1} parent=1 // pred_check_branch
      %36 = sbr.rel (0) target = $region17
    $region16: #{tpu_custom_call.1} parent=1 // pred_region
      %37 = dma.done [#allocation6], 256
    $region17: #{tpu_custom_call.1} parent=1 // pred_fallthru
      _
    %v38 = vld [vmem:[#allocation2] sm:$0x1]
    %vm39 = vcmp.gt.s32.totalorder %v38, 0
    %v40 = vsel %vm39, %v38, 0
    %vm41 = vcmp.lt.s32.totalorder %v40, 15
    %v42 = vsel %vm41, %v40, 15
    %v43 = vlaneseq
    %v44 = vshrl.u32 %v43, 7
    %v45 = vadd.s32 %v44, 8
    %v46 = vlaneseq
    %v47 = vshrl.u32 %v46, 7
    %v48 = vsub.s32 0, %v47
    %v49 = vrot.slane %v42, %v48
    %vm50 = vcmp.eq.s32.totalorder %v49, %v44
    %vm51 = vcmp.eq.s32.totalorder %v49, %v45
    %v52 = vsel %vm50, 1, 0
    %v53 = vsel %vm51, 1, 0
    %v54 = vcvt.s32.f32 %v52
    %v55 = vcvt.s32.f32 %v53
    %v56 = vld [vmem:[#allocation5] sm:$0xff]
    %v57 = vld [vmem:[#allocation5 + $0x8] sm:$0xff]
    %58 = vxpose.xlu0.b32.start [1/16] %v54, 128
    %59 = vxpose.xlu0.b32.cont [2/16] %v55, 128
    %60 = vxpose.xlu0.b32.cont [3/16] 0.0, 128
    %61 = vxpose.xlu0.b32.cont [4/16] 0.0, 128
    %62 = vxpose.xlu0.b32.cont [5/16] 0.0, 128
    %63 = vxpose.xlu0.b32.cont [6/16] 0.0, 128
    %64 = vxpose.xlu0.b32.cont [7/16] 0.0, 128
    %65 = vxpose.xlu0.b32.cont [8/16] 0.0, 128
    %66 = vxpose.xlu0.b32.cont [9/16] 0.0, 128
    %67 = vxpose.xlu0.b32.cont [10/16] 0.0, 128
    %68 = vxpose.xlu0.b32.cont [11/16] 0.0, 128
    %69 = vxpose.xlu0.b32.cont [12/16] 0.0, 128
    %70 = vxpose.xlu0.b32.cont [13/16] 0.0, 128
    %71 = vxpose.xlu0.b32.cont [14/16] 0.0, 128
    %72 = vxpose.xlu0.b32.cont [15/16] 0.0, 128
    %73 = vxpose.xlu0.b32.end [16/16] 0.0, 128
    %v74 = vpop.trf.xlu0
    %v75 = vpop.trf.xlu0
    %v76 = vpop.trf.xlu0
    %v77 = vpop.trf.xlu0
    %v78 = vpop.trf.xlu0
    %v79 = vpop.trf.xlu0
    %v80 = vpop.trf.xlu0
    %v81 = vpop.trf.xlu0
    %v82 = vpop.trf.xlu0
    %v83 = vpop.trf.xlu0
    %v84 = vpop.trf.xlu0
    %v85 = vpop.trf.xlu0
    %v86 = vpop.trf.xlu0
    %v87 = vpop.trf.xlu0
    %v88 = vpop.trf.xlu0
    %v89 = vpop.trf.xlu0
    %vm90 = vcmask 130048
    %v92 = vsel %vm90, %v74, 0
    %v95 = vsel %vm90, %v75, 0
    %v98 = vsel %vm90, %v76, 0
    %v101 = vsel %vm90, %v77, 0
    %v104 = vsel %vm90, %v78, 0
    %v107 = vsel %vm90, %v79, 0
    %v110 = vsel %vm90, %v80, 0
    %v113 = vsel %vm90, %v81, 0
    %115 = vmatprep.subr.mxu0 0.0
    %116 = vmatpush1.msra.mxu0 %v56
    %117 = vmatprep.subr.mxu0 0.0
    %118 = vmatpush1.msra.mxu0 %v57
    %119 = vmatprep.subr.mxu0 0.0
    %120 = vmatpush1.msra.mxu0 0.0
    %121 = vmatprep.subr.mxu0 0.0
    %122 = vmatpush1.msra.mxu0 0.0
    %123 = vmatprep.subr.mxu0 0.0
    %124 = vmatpush1.msra.mxu0 0.0
    %125 = vmatprep.subr.mxu0 0.0
    %126 = vmatpush1.msra.mxu0 0.0
    %127 = vmatprep.subr.mxu0 0.0
    %128 = vmatpush1.msra.mxu0 0.0
    %129 = vmatprep.subr.mxu0 0.0
    %130 = vmatpush1.msra.mxu0 0.0
    %131 = vmatprep.subr.mxu0 0.0
    %132 = vmatpush1.msra.mxu0 0.0
    %133 = vmatprep.subr.mxu0 0.0
    %134 = vmatpush1.msra.mxu0 0.0
    %135 = vmatprep.subr.mxu0 0.0
    %136 = vmatpush1.msra.mxu0 0.0
    %137 = vmatprep.subr.mxu0 0.0
    %138 = vmatpush1.msra.mxu0 0.0
    %139 = vmatprep.subr.mxu0 0.0
    %140 = vmatpush1.msra.mxu0 0.0
    %141 = vmatprep.subr.mxu0 0.0
    %142 = vmatpush1.msra.mxu0 0.0
    %143 = vmatprep.subr.mxu0 0.0
    %144 = vmatpush1.msra.mxu0 0.0
    %145 = vmatprep.subr.mxu0 0.0
    %146 = vmatpush1.msra.mxu0 0.0
    %147 = vmatprep.subr.mxu0 0.0
    %148 = vmatpush1.msra.mxu0 0.0
    %149 = vmatprep.subr.mxu0 0.0
    %150 = vmatpush1.msra.mxu0 0.0
    %151 = vmatprep.subr.mxu0 0.0
    %152 = vmatpush1.msra.mxu0 0.0
    %153 = vmatprep.subr.mxu0 0.0
    %154 = vmatpush1.msra.mxu0 0.0
    %155 = vmatprep.subr.mxu0 0.0
    %156 = vmatpush1.msra.mxu0 0.0
    %157 = vmatprep.subr.mxu0 0.0
    %158 = vmatpush1.msra.mxu0 0.0
    %159 = vmatprep.subr.mxu0 0.0
    %160 = vmatpush1.msra.mxu0 0.0
    %161 = vmatprep.subr.mxu0 0.0
    %162 = vmatpush1.msra.mxu0 0.0
    %163 = vmatprep.subr.mxu0 0.0
    %164 = vmatpush1.msra.mxu0 0.0
    %165 = vmatprep.subr.mxu0 0.0
    %166 = vmatpush1.msra.mxu0 0.0
    %167 = vmatprep.subr.mxu0 0.0
    %168 = vmatpush1.msra.mxu0 0.0
    %169 = vmatprep.subr.mxu0 0.0
    %170 = vmatpush1.msra.mxu0 0.0
    %171 = vmatprep.subr.mxu0 0.0
    %172 = vmatpush1.msra.mxu0 0.0
    %173 = vmatprep.subr.mxu0 0.0
    %174 = vmatpush1.msra.mxu0 0.0
    %175 = vmatprep.subr.mxu0 0.0
    %176 = vmatpush1.msra.mxu0 0.0
    %177 = vmatprep.subr.mxu0 0.0
    %178 = vmatpush1.msra.mxu0 0.0
    %179 = vmatprep.mubr.f32.mxu0 0.0
    %180 = vmatmul.mubr.f32.gmra.mrb[0].mxu0 %v92
    %v181 = vpop.f32.mrb[0].mxu0
    %v182 = vadd.f32 0.0, %v181
    %v183 = vpop.f32.mrb[0].mxu0
    %184 = vmatprep.mubr.f32.mxu0 0.0
    %185 = vmatmul.mubr.f32.gmra.mrb[0].mxu0 %v95
    %v186 = vpop.f32.mrb[0].mxu0
    %v187 = vadd.f32 0.0, %v186
    %v188 = vpop.f32.mrb[0].mxu0
    %189 = vmatprep.mubr.f32.mxu0 0.0
    %190 = vmatmul.mubr.f32.gmra.mrb[0].mxu0 %v98
    %v191 = vpop.f32.mrb[0].mxu0
    %v192 = vadd.f32 0.0, %v191
    %v193 = vpop.f32.mrb[0].mxu0
    %194 = vmatprep.mubr.f32.mxu0 0.0
    %195 = vmatmul.mubr.f32.gmra.mrb[0].mxu0 %v101
    %v196 = vpop.f32.mrb[0].mxu0
    %v197 = vadd.f32 0.0, %v196
    %v198 = vpop.f32.mrb[0].mxu0
    %199 = vmatprep.mubr.f32.mxu0 0.0
    %200 = vmatmul.mubr.f32.gmra.mrb[0].mxu0 %v104
    %v201 = vpop.f32.mrb[0].mxu0
    %v202 = vadd.f32 0.0, %v201
    %v203 = vpop.f32.mrb[0].mxu0
    %204 = vmatprep.mubr.f32.mxu0 0.0
    %205 = vmatmul.mubr.f32.gmra.mrb[0].mxu0 %v107
    %v206 = vpop.f32.mrb[0].mxu0
    %v207 = vadd.f32 0.0, %v206
    %v208 = vpop.f32.mrb[0].mxu0
    %209 = vmatprep.mubr.f32.mxu0 0.0
    %210 = vmatmul.mubr.f32.gmra.mrb[0].mxu0 %v110
    %v211 = vpop.f32.mrb[0].mxu0
    %v212 = vadd.f32 0.0, %v211
    %v213 = vpop.f32.mrb[0].mxu0
    %214 = vmatprep.mubr.f32.mxu0 0.0
    %215 = vmatmul.mubr.f32.gmra.mrb[0].mxu0 %v113
    %v216 = vpop.f32.mrb[0].mxu0
    %v217 = vadd.f32 0.0, %v216
    %v218 = vpop.f32.mrb[0].mxu0
    %219 = vdwg.mxu0
    %220 = vst [vmem:[#allocation7] sm:$0xff] %v182
    %221 = vst [vmem:[#allocation7 + $0x8] sm:$0xff] %v187
    %222 = vst [vmem:[#allocation7 + $0x10] sm:$0xff] %v192
    %223 = vst [vmem:[#allocation7 + $0x18] sm:$0xff] %v197
    %224 = vst [vmem:[#allocation7 + $0x20] sm:$0xff] %v202
    %225 = vst [vmem:[#allocation7 + $0x28] sm:$0xff] %v207
    %226 = vst [vmem:[#allocation7 + $0x30] sm:$0xff] %v212
    %227 = vst [vmem:[#allocation7 + $0x38] sm:$0xff] %v217
    // Predicated region
    $region18: #{tpu_custom_call.1} parent=1 // pred_check
      _
    $region19: #{tpu_custom_call.1} parent=1 // pred_check_branch
      %229 = sbr.rel (0) target = $region21
    $region20: #{tpu_custom_call.1} parent=1 // pred_region
      %s231 = ssub.s32 1024, 1024
      %232 = vsyncadd [#allocation4], %s231
      %s233 = sshll.u32 [#allocation7], 4
      %s234 = int_to_ptr.vmem [resolvable:$true] %s233
      %239 = dma.vmem_to_hbm [thread:$0]  %s234, 1024, %s2, [#allocation4], 128, 128, 8
    $region21: #{tpu_custom_call.1} parent=1 // pred_fallthru
      _
    // Predicated region
    $region22: #{tpu_custom_call.1} parent=1 // pred_check
      _
    $region23: #{tpu_custom_call.1} parent=1 // pred_check_branch
      %241 = sbr.rel (0) target = $region25
    $region24: #{tpu_custom_call.1} parent=1 // pred_region
      %242 = dma.done [#allocation4], 1024
    $region25: #{tpu_custom_call.1} parent=1 // pred_fallthru
      _
    %243 = vsyncpa [#allocation3], 1
    %244 = vsyncpa [#allocation6], 1
    %245 = vsyncpa [#allocation4], 1

</llo_original>
